<compile_context>
chip_gen: v7x
topology: tpu7x:2x2x1
jax: 0.10.0
libtpu: 0.0.40
codegen_flags: <defaults>
</compile_context>

<pallas_src>
import functools

import jax
import jax.numpy as jnp
from jax import lax
from jax.experimental import pallas as pl
from jax.experimental.pallas import tpu as pltpu

_NORM_EPS = 1e-12   # F.normalize default eps
_COS_EPS = 1e-8     # F.cosine_similarity default eps (denominator == 1 here; see note)

_LANE = 128
_TARGET_HBM_BLOCK_BYTES = 8 * 1024 * 1024    # ~8 MiB of reference HBM bytes per block
_VMEM_BUDGET_BYTES = 36 * 1024 * 1024        # 2x input double-buffer + ~2x f32 temps
_VMEM_LIMIT_BYTES = 48 * 1024 * 1024         # scoped VMEM; < 64 MiB (v7x physical)


def _cosine_similarity_kernel(q_ref, r_ref, o_ref):
    # q_ref: (1, D)   r_ref: (TILE_N, D)   o_ref: (1, TILE_N)  (lane-dense)
    q = q_ref[...]                                # (1, D), native dtype
    r = r_ref[...]                                # (TILE_N, D), native dtype

    # Row-wise contractions on the MXU so the per-row scalars land lane-major:
    #   dot[0, i] = sum_d q[d] * r[i, d]
    #   s_r[0, i] = sum_d r[i, d]^2
    dot = jnp.einsum('md,nd->mn', q, r,
                     preferred_element_type=jnp.float32)              # (1, TILE_N)
    rr = jnp.square(r.astype(jnp.float32))                            # (TILE_N, D)
    ones_row = jnp.ones((1, r.shape[-1]), jnp.float32)                # (1, D)
    s_r = jnp.einsum('md,nd->mn', ones_row, rr,
                     preferred_element_type=jnp.float32)              # (1, TILE_N)

    qf = q.astype(jnp.float32)
    s_q = jnp.sum(qf * qf, axis=-1, keepdims=True)                    # (1, 1)

    # F.normalize: x / max(||x||, 1e-12)  ==  x * rsqrt(max(||x||^2, 1e-24))
    inv_q = lax.rsqrt(jnp.maximum(s_q, _NORM_EPS * _NORM_EPS))        # (1, 1)
    inv_r = lax.rsqrt(jnp.maximum(s_r, _NORM_EPS * _NORM_EPS))        # (1, TILE_N)

    # After normalization, ||qn|| == ||rn|| == 1 for any row with norm >= 1e-12, so
    # F.cosine_similarity's denominator max(||qn||*||rn||, 1e-8) == 1.  Sub-eps rows
    # produce tiny values either way and are handled identically by the [0,1] clamp.
    sim = dot * (inv_q * inv_r)                                       # (1, TILE_N)
    o_ref[...] = jnp.clip(sim, 0.0, 1.0).astype(o_ref.dtype)


def _round_up(x, m):
    return ((x + m - 1) // m) * m


def _choose_tile_n(n_rows, d, itemsize):
    """Row tile: multiple of 128, ~8 MiB HBM bytes/block, lane-padded VMEM budget."""
    hbm_row = max(d * itemsize, 1)                       # bytes moved from HBM per row
    d_pad = _round_up(max(d, 1), _LANE)                  # last dim pads to 128 lanes
    vmem_row_in = d_pad * itemsize                       # streamed block row (native)
    vmem_row_f32 = d_pad * 4                             # in-kernel f32 temporaries

    # ~8 MiB of HBM bytes per block to amortize the per-grid-step fixed cost.
    tile = _round_up(max(_TARGET_HBM_BLOCK_BYTES // hbm_row, _LANE), _LANE)

    # VMEM: 2x double-buffered input block + ~2x tile of f32 temps (rr, cast).
    per_row_vmem = 2 * vmem_row_in + 2 * vmem_row_f32
    vmem_cap = max((_VMEM_BUDGET_BYTES // per_row_vmem) // _LANE * _LANE, _LANE)
    tile = min(tile, vmem_cap)

    # Never bigger than the (lane-padded) row count.
    n_pad = _round_up(max(n_rows, 1), _LANE)
    tile = min(tile, n_pad)

    # Keep >= 2 row tiles when possible so v7x's two TensorCores both get work.
    if n_pad >= 2 * _LANE:
        tile = min(tile, max(_LANE, (n_pad // 2) // _LANE * _LANE))

    return max(tile, _LANE)


@functools.partial(jax.jit, static_argnames=("tile_n",))
def _cosine_similarity_impl(query, reference, tile_n):
    n, d = reference.shape
    num_tiles = pl.cdiv(n, tile_n)   # ragged last block handled by Pallas (masked store)

    out = pl.pallas_call(
        _cosine_similarity_kernel,
        out_shape=jax.ShapeDtypeStruct((1, n), reference.dtype),
        grid_spec=pltpu.PrefetchScalarGridSpec(
            num_scalar_prefetch=0,
            grid=(num_tiles,),
            in_specs=[
                pl.BlockSpec((1, d), lambda i: (0, 0)),        # query (resident)
                pl.BlockSpec((tile_n, d), lambda i: (i, 0)),   # reference row tile
            ],
            out_specs=pl.BlockSpec((1, tile_n), lambda i: (0, i)),  # lane-dense row
        ),
        compiler_params=pltpu.CompilerParams(
            # row tiles are independent -> shard across v7x's 2 TensorCores
            dimension_semantics=("parallel",),
            vmem_limit_bytes=_VMEM_LIMIT_BYTES,
        ),
    )(query, reference)
    return out[0]


def cosine_similarity(query, reference, *, tile_n=None):
    """query: (1, D) or (D,); reference: (N, D). Returns (N,) clamped cos-sim."""
    reference = jnp.asarray(reference)
    query = jnp.asarray(query, dtype=reference.dtype)
    if query.ndim == 1:
        query = query[None, :]
    n, d = reference.shape
    assert query.shape == (1, d), "query must be (1, D) to match torch expand()"
    if tile_n is None:
        tile_n = _choose_tile_n(n, d, reference.dtype.itemsize)
    return _cosine_similarity_impl(query, reference, tile_n=tile_n)


def _reference_cosine_similarity(query, reference):
    """Pure-JAX, torch-faithful reference."""
    qn = query / jnp.maximum(jnp.linalg.norm(query, axis=-1, keepdims=True), _NORM_EPS)
    rn = reference / jnp.maximum(
        jnp.linalg.norm(reference, axis=-1, keepdims=True), _NORM_EPS)
    dot = jnp.sum(qn * rn, axis=-1)
    den = jnp.maximum(jnp.linalg.norm(qn, axis=-1) * jnp.linalg.norm(rn, axis=-1),
                      _COS_EPS)
    return jnp.clip(dot / den, 0.0, 1.0)


if __name__ == "__main__":
    key = jax.random.PRNGKey(0)
    kq, kr, kq2, kr2 = jax.random.split(key, 4)

    # shapes implied by the module: query (1, D), reference (N, D)
    D = 32
    N = 8
    query = jax.random.normal(kq, (1, D), dtype=jnp.float32)
    reference = jax.random.normal(kr, (N, D), dtype=jnp.float32)

    sim = cosine_similarity(query, reference)
    jax.block_until_ready(sim)

    ref_out = _reference_cosine_similarity(query, reference)
    assert sim.shape == (N,)
    assert jnp.allclose(sim, ref_out, atol=1e-2), (sim, ref_out)

    # exercise the multi-tile grid with a ragged last block (no wrapper padding)
    N2 = 300
    query2 = jax.random.normal(kq2, (1, D), dtype=jnp.float32)
    reference2 = jax.random.normal(kr2, (N2, D), dtype=jnp.float32)
    sim2 = cosine_similarity(query2, reference2, tile_n=128)
    jax.block_until_ready(sim2)
    ref_out2 = _reference_cosine_similarity(query2, reference2)
    assert sim2.shape == (N2,)
    assert jnp.allclose(sim2, ref_out2, atol=1e-2), (sim2, ref_out2)

    # bf16 path: streamed block stays bf16 into the MXU (f32 accumulation)
    ref_bf16 = reference2.astype(jnp.bfloat16)
    q_bf16 = query2.astype(jnp.bfloat16)
    sim3 = cosine_similarity(q_bf16, ref_bf16, tile_n=128)
    jax.block_until_ready(sim3)
    ref_out3 = _reference_cosine_similarity(q_bf16.astype(jnp.float32),
                                            ref_bf16.astype(jnp.float32))
    assert jnp.allclose(sim3.astype(jnp.float32), ref_out3, atol=3e-2), (sim3, ref_out3)

    print("KERNEL_OK")
</pallas_src>

<mosaic_0001>
module attributes {stable_mosaic.version = 11 : i64} {
  func.func @_cosine_similarity_kernel(%arg0: i32, %arg1: memref<1x32xf32, #tpu.memory_space<vmem>>, %arg2: memref<128x32xf32, #tpu.memory_space<vmem>>, %arg3: memref<1x128xf32, #tpu.memory_space<vmem>>) attributes {dimension_semantics = [#tpu.dimension_semantics<parallel>], iteration_bounds = array<i64: 1>, scalar_prefetch = 0 : i64, scratch_operands = 0 : i64, tpu.core_type = #tpu.core_type<tc>, window_params = [{pipeline_mode = #tpu.pipeline_mode<synchronous>, transform_indices = @transform_0, window_bounds = array<i64: 1, 32>}, {transform_indices = @transform_1, window_bounds = array<i64: 128, 32>}, {transform_indices = @transform_2, window_bounds = array<i64: 1, 128>}]} {
    %c0 = arith.constant 0 : index
    %c0_0 = arith.constant 0 : index
    %0 = vector.load %arg1[%c0, %c0_0] : memref<1x32xf32, #tpu.memory_space<vmem>>, vector<1x32xf32>
    %c0_1 = arith.constant 0 : index
    %c0_2 = arith.constant 0 : index
    %1 = vector.load %arg2[%c0_1, %c0_2] : memref<128x32xf32, #tpu.memory_space<vmem>>, vector<128x32xf32>
    "tpu.trace_start"() <{level = 10 : i32, message = "md,nd->mn"}> : () -> ()
    %cst = arith.constant dense<0.000000e+00> : vector<1x128xf32>
    %2 = tpu.matmul %0, %1, %cst {dimension_numbers = #tpu.dot_dimension_numbers<[1], [1], [0], [0], [0, 0, 1, 0], [], []>} : vector<1x32xf32>, vector<128x32xf32>, vector<1x128xf32> -> vector<1x128xf32>
    "tpu.trace_stop"() : () -> ()
    %3 = arith.mulf %1, %1 : vector<128x32xf32>
    %cst_3 = arith.constant 1.000000e+00 : f32
    %4 = vector.broadcast %cst_3 : f32 to vector<1x32xf32>
    "tpu.trace_start"() <{level = 10 : i32, message = "md,nd->mn"}> : () -> ()
    %cst_4 = arith.constant dense<0.000000e+00> : vector<1x128xf32>
    %5 = tpu.matmul %4, %3, %cst_4 {dimension_numbers = #tpu.dot_dimension_numbers<[1], [1], [0], [0], [0, 0, 1, 0], [], []>} : vector<1x32xf32>, vector<128x32xf32>, vector<1x128xf32> -> vector<1x128xf32>
    "tpu.trace_stop"() : () -> ()
    %6 = arith.mulf %0, %0 : vector<1x32xf32>
    %cst_5 = arith.constant dense<0.000000e+00> : vector<1xf32>
    %7 = vector.multi_reduction <add>, %6, %cst_5 [1] : vector<1x32xf32> to vector<1xf32>
    %8 = vector.shape_cast %7 : vector<1xf32> to vector<1x1xf32>
    %cst_6 = arith.constant 1.000000e-24 : f32
    %9 = vector.broadcast %cst_6 : f32 to vector<1x1xf32>
    %10 = arith.maximumf %8, %9 : vector<1x1xf32>
    %11 = math.rsqrt %10 : vector<1x1xf32>
    %cst_7 = arith.constant 1.000000e-24 : f32
    %12 = vector.broadcast %cst_7 : f32 to vector<1x128xf32>
    %13 = arith.maximumf %5, %12 : vector<1x128xf32>
    %14 = math.rsqrt %13 : vector<1x128xf32>
    %15 = vector.broadcast %11 : vector<1x1xf32> to vector<1x128xf32>
    %16 = arith.mulf %15, %14 : vector<1x128xf32>
    %17 = arith.mulf %2, %16 : vector<1x128xf32>
    %cst_8 = arith.constant 0.000000e+00 : f32
    %cst_9 = arith.constant 1.000000e+00 : f32
    %18 = vector.broadcast %cst_8 : f32 to vector<1x128xf32>
    %19 = arith.maximumf %18, %17 : vector<1x128xf32>
    %20 = vector.broadcast %cst_9 : f32 to vector<1x128xf32>
    %21 = arith.minimumf %20, %19 : vector<1x128xf32>
    %c0_10 = arith.constant 0 : index
    %c0_11 = arith.constant 0 : index
    %22 = vector.load %arg3[%c0_10, %c0_11] : memref<1x128xf32, #tpu.memory_space<vmem>>, vector<1x128xf32>
    tpu.vector_store %arg3[%c0_10, %c0_11], %21 {strides = array<i32>} : memref<1x128xf32, #tpu.memory_space<vmem>>, vector<1x128xf32>,
    return
  }
  func.func @transform_0(%arg0: i32) -> (i32, i32) {
    %c0_i32 = arith.constant 0 : i32
    %c0_i32_0 = arith.constant 0 : i32
    %c0_i32_1 = arith.constant 0 : i32
    return %c0_i32, %c0_i32_0 : i32, i32
  }
  func.func @transform_1(%arg0: i32) -> (i32, i32) {
    %c0_i32 = arith.constant 0 : i32
    %c0_i32_0 = arith.constant 0 : i32
    return %arg0, %c0_i32 : i32, i32
  }
  func.func @transform_2(%arg0: i32) -> (i32, i32) {
    %c0_i32 = arith.constant 0 : i32
    %c0_i32_0 = arith.constant 0 : i32
    return %c0_i32, %arg0 : i32, i32
  }
}

</mosaic_0001>

<llo_original>
// kernel: _cosine_similarity_impl.1
$region0: #{_cosine_similarity_impl.1}
  #allocation0 [shape = 'u32[]', space=smem, size = 0x4, offset = 0x4, fixed_abs, tag = 'smem constant byte address 0x4 - core index']
  #allocation1 [shape = 'u32[144,128]{1,0:T(1,128)}', space=vmem, size = 0x12000, scoped, tag = 'internal scratch']
  %s0 = inlined_call_operand.hbm [shape: f32[1,32], index: 0, kind: input, shape index: {}]
  %s1 = inlined_call_operand.hbm [shape: f32[8,32], index: 1, kind: input, shape index: {}]
  %s2 = inlined_call_operand.hbm [shape: f32[1,8], index: 2, kind: output, shape index: {}]
  %s3 = sld [smem:[#allocation0]]
  $region26: #{_cosine_similarity_impl.1} parent=0
    _
  %s5 = ssub.s32 1, %s3
  %s6 = scalar_select 0, %s5, %s3
  $region1: #{_cosine_similarity_impl.1} parent=0
    #allocation2 [shape = 'u8[512]{0}', space=vmem, size = 0x400, scoped, tag = 'input window, operand 0, single buffered']
    #allocation3 [shape = 's32[1]{0}', space=sflag, size = 0x4, scoped, tag = 'scoped memory for _cosine_similarity_impl.1']
    #allocation4 [shape = 's32[1]{0}', space=sflag, size = 0x4, scoped, tag = 'scoped memory for _cosine_similarity_impl.1']
    #allocation5 [shape = 'u8[65536]{0}', space=vmem, size = 0x10000, scoped, tag = 'input window, operand 1, single buffered']
    #allocation6 [shape = 's32[1]{0}', space=sflag, size = 0x4, scoped, tag = 'scoped memory for _cosine_similarity_impl.1']
    #allocation7 [shape = 'u8[512]{0}', space=vmem, size = 0x400, scoped, tag = 'output window, operand 0, single buffered']
    %7 = vsyncpa [#allocation3], 0
    %8 = vsyncpa [#allocation6], 0
    %9 = vsyncpa [#allocation4], 0
    // Predicated region
    $region2: #{_cosine_similarity_impl.1} parent=1 // pred_check
      _
    $region3: #{_cosine_similarity_impl.1} parent=1 // pred_check_branch
      %11 = sbr.rel (0) target = $region5
    $region4: #{_cosine_similarity_impl.1} parent=1 // pred_region
      %s13 = ssub.s32 16, 16
      %14 = vsyncadd [#allocation3], %s13
      %s16 = sshll.u32 [#allocation2], 4
      %s17 = int_to_ptr.vmem [resolvable:$true] %s16
      %19 = dma.hbm_to_vmem [thread:$0]  %s0, 16, %s17, [#allocation3]
    $region5: #{_cosine_similarity_impl.1} parent=1 // pred_fallthru
      _
    // Predicated region
    $region6: #{_cosine_similarity_impl.1} parent=1 // pred_check
      _
    $region7: #{_cosine_similarity_impl.1} parent=1 // pred_check_branch
      %21 = sbr.rel (0) target = $region9
    $region8: #{_cosine_similarity_impl.1} parent=1 // pred_region
      %s23 = ssub.s32 2048, 128
      %24 = vsyncadd [#allocation6], %s23
      %s25 = sshll.u32 [#allocation5], 4
      %s26 = int_to_ptr.vmem [resolvable:$true] %s25
      %31 = dma.hbm_to_vmem [thread:$0]  %s1, 128, %s26, [#allocation6], 128, 128, 8
    $region9: #{_cosine_similarity_impl.1} parent=1 // pred_fallthru
      _
    // Predicated region
    $region10: #{_cosine_similarity_impl.1} parent=1 // pred_check
      _
    $region11: #{_cosine_similarity_impl.1} parent=1 // pred_check_branch
      %33 = sbr.rel (0) target = $region13
    $region12: #{_cosine_similarity_impl.1} parent=1 // pred_region
      %34 = dma.done [#allocation3], 16
    $region13: #{_cosine_similarity_impl.1} parent=1 // pred_fallthru
      _
    // Predicated region
    $region14: #{_cosine_similarity_impl.1} parent=1 // pred_check
      _
    $region15: #{_cosine_similarity_impl.1} parent=1 // pred_check_branch
      %36 = sbr.rel (0) target = $region17
    $region16: #{_cosine_similarity_impl.1} parent=1 // pred_region
      %37 = dma.done [#allocation6], 2048
    $region17: #{_cosine_similarity_impl.1} parent=1 // pred_fallthru
      _
    %v38 = vld [vmem:[#allocation2] sm:$0x1]
    %v39 = vld [vmem:[#allocation5] sm:$0xff]
    %v40 = vld [vmem:[#allocation5 + $0x8] sm:$0xff]
    %v41 = vld [vmem:[#allocation5 + $0x10] sm:$0xff]
    %v42 = vld [vmem:[#allocation5 + $0x18] sm:$0xff]
    %v43 = vld [vmem:[#allocation5 + $0x20] sm:$0xff]
    %v44 = vld [vmem:[#allocation5 + $0x28] sm:$0xff]
    %v45 = vld [vmem:[#allocation5 + $0x30] sm:$0xff]
    %v46 = vld [vmem:[#allocation5 + $0x38] sm:$0xff]
    %v47 = vld [vmem:[#allocation5 + $0x40] sm:$0xff]
    %v48 = vld [vmem:[#allocation5 + $0x48] sm:$0xff]
    %v49 = vld [vmem:[#allocation5 + $0x50] sm:$0xff]
    %v50 = vld [vmem:[#allocation5 + $0x58] sm:$0xff]
    %v51 = vld [vmem:[#allocation5 + $0x60] sm:$0xff]
    %v52 = vld [vmem:[#allocation5 + $0x68] sm:$0xff]
    %v53 = vld [vmem:[#allocation5 + $0x70] sm:$0xff]
    %v54 = vld [vmem:[#allocation5 + $0x78] sm:$0xff]
    %vm55 = vcmask 261120
    %v57 = vsel %vm55, %v38, 0
    %v60 = vsel %vm55, %v39, 0
    %v63 = vsel %vm55, %v40, 0
    %v66 = vsel %vm55, %v41, 0
    %v69 = vsel %vm55, %v42, 0
    %v72 = vsel %vm55, %v43, 0
    %v75 = vsel %vm55, %v44, 0
    %v78 = vsel %vm55, %v45, 0
    %v81 = vsel %vm55, %v46, 0
    %v84 = vsel %vm55, %v47, 0
    %v87 = vsel %vm55, %v48, 0
    %v90 = vsel %vm55, %v49, 0
    %v93 = vsel %vm55, %v50, 0
    %v96 = vsel %vm55, %v51, 0
    %v99 = vsel %vm55, %v52, 0
    %v102 = vsel %vm55, %v53, 0
    %v105 = vsel %vm55, %v54, 0
    %107 = vmatprep.subr.mxu0 0.0
    %108 = vmatpush1.xpose.msra.mxu0 %v60
    %109 = vmatprep.subr.mxu0 0.0
    %110 = vmatpush1.xpose.msra.mxu0 %v63
    %111 = vmatprep.subr.mxu0 0.0
    %112 = vmatpush1.xpose.msra.mxu0 %v66
    %113 = vmatprep.subr.mxu0 0.0
    %114 = vmatpush1.xpose.msra.mxu0 %v69
    %115 = vmatprep.subr.mxu0 0.0
    %116 = vmatpush1.xpose.msra.mxu0 %v72
    %117 = vmatprep.subr.mxu0 0.0
    %118 = vmatpush1.xpose.msra.mxu0 %v75
    %119 = vmatprep.subr.mxu0 0.0
    %120 = vmatpush1.xpose.msra.mxu0 %v78
    %121 = vmatprep.subr.mxu0 0.0
    %122 = vmatpush1.xpose.msra.mxu0 %v81
    %123 = vmatprep.subr.mxu0 0.0
    %124 = vmatpush1.xpose.msra.mxu0 %v84
    %125 = vmatprep.subr.mxu0 0.0
    %126 = vmatpush1.xpose.msra.mxu0 %v87
    %127 = vmatprep.subr.mxu0 0.0
    %128 = vmatpush1.xpose.msra.mxu0 %v90
    %129 = vmatprep.subr.mxu0 0.0
    %130 = vmatpush1.xpose.msra.mxu0 %v93
    %131 = vmatprep.subr.mxu0 0.0
    %132 = vmatpush1.xpose.msra.mxu0 %v96
    %133 = vmatprep.subr.mxu0 0.0
    %134 = vmatpush1.xpose.msra.mxu0 %v99
    %135 = vmatprep.subr.mxu0 0.0
    %136 = vmatpush1.xpose.msra.mxu0 %v102
    %137 = vmatprep.subr.mxu0 0.0
    %138 = vmatpush1.xpose.msra.mxu0 %v105
    %139 = vmatprep.subr.mxu0 0.0
    %140 = vmatpush1.xpose.msra.mxu0 0.0
    %141 = vmatprep.subr.mxu0 0.0
    %142 = vmatpush1.xpose.msra.mxu0 0.0
    %143 = vmatprep.subr.mxu0 0.0
    %144 = vmatpush1.xpose.msra.mxu0 0.0
    %145 = vmatprep.subr.mxu0 0.0
    %146 = vmatpush1.xpose.msra.mxu0 0.0
    %147 = vmatprep.subr.mxu0 0.0
    %148 = vmatpush1.xpose.msra.mxu0 0.0
    %149 = vmatprep.subr.mxu0 0.0
    %150 = vmatpush1.xpose.msra.mxu0 0.0
    %151 = vmatprep.subr.mxu0 0.0
    %152 = vmatpush1.xpose.msra.mxu0 0.0
    %153 = vmatprep.subr.mxu0 0.0
    %154 = vmatpush1.xpose.msra.mxu0 0.0
    %155 = vmatprep.subr.mxu0 0.0
    %156 = vmatpush1.xpose.msra.mxu0 0.0
    %157 = vmatprep.subr.mxu0 0.0
    %158 = vmatpush1.xpose.msra.mxu0 0.0
    %159 = vmatprep.subr.mxu0 0.0
    %160 = vmatpush1.xpose.msra.mxu0 0.0
    %161 = vmatprep.subr.mxu0 0.0
    %162 = vmatpush1.xpose.msra.mxu0 0.0
    %163 = vmatprep.subr.mxu0 0.0
    %164 = vmatpush1.xpose.msra.mxu0 0.0
    %165 = vmatprep.subr.mxu0 0.0
    %166 = vmatpush1.xpose.msra.mxu0 0.0
    %167 = vmatprep.subr.mxu0 0.0
    %168 = vmatpush1.xpose.msra.mxu0 0.0
    %169 = vmatprep.subr.mxu0 0.0
    %170 = vmatpush1.xpose.msra.mxu0 0.0
    %171 = vmatprep.mubr.f32.mxu0 0.0
    %172 = vmatmul.mubr.f32.gmra.mrb[0].mxu0 %v57
    %v173 = vpop.f32.mrb[0].mxu0
    %v174 = vadd.f32 0.0, %v173
    %v175 = vpop.f32.mrb[0].mxu0
    %176 = vdwg.mxu0
    %v177 = vmul.f32 %v39, %v39
    %v178 = vmul.f32 %v40, %v40
    %v179 = vmul.f32 %v41, %v41
    %v180 = vmul.f32 %v42, %v42
    %v181 = vmul.f32 %v43, %v43
    %v182 = vmul.f32 %v44, %v44
    %v183 = vmul.f32 %v45, %v45
    %v184 = vmul.f32 %v46, %v46
    %v185 = vmul.f32 %v47, %v47
    %v186 = vmul.f32 %v48, %v48
    %v187 = vmul.f32 %v49, %v49
    %v188 = vmul.f32 %v50, %v50
    %v189 = vmul.f32 %v51, %v51
    %v190 = vmul.f32 %v52, %v52
    %v191 = vmul.f32 %v53, %v53
    %v192 = vmul.f32 %v54, %v54
    %v194 = vsel %vm55, 1.0, 0
    %v197 = vsel %vm55, %v177, 0
    %v200 = vsel %vm55, %v178, 0
    %v203 = vsel %vm55, %v179, 0
    %v206 = vsel %vm55, %v180, 0
    %v209 = vsel %vm55, %v181, 0
    %v212 = vsel %vm55, %v182, 0
    %v215 = vsel %vm55, %v183, 0
    %v218 = vsel %vm55, %v184, 0
    %v221 = vsel %vm55, %v185, 0
    %v224 = vsel %vm55, %v186, 0
    %v227 = vsel %vm55, %v187, 0
    %v230 = vsel %vm55, %v188, 0
    %v233 = vsel %vm55, %v189, 0
    %v236 = vsel %vm55, %v190, 0
    %v239 = vsel %vm55, %v191, 0
    %v242 = vsel %vm55, %v192, 0
    %244 = vmatprep.subr.mxu0 0.0
    %245 = vmatpush1.xpose.msra.mxu0 %v197
    %246 = vmatprep.subr.mxu0 0.0
    %247 = vmatpush1.xpose.msra.mxu0 %v200
    %248 = vmatprep.subr.mxu0 0.0
    %249 = vmatpush1.xpose.msra.mxu0 %v203
    %250 = vmatprep.subr.mxu0 0.0
    %251 = vmatpush1.xpose.msra.mxu0 %v206
    %252 = vmatprep.subr.mxu0 0.0
    %253 = vmatpush1.xpose.msra.mxu0 %v209
    %254 = vmatprep.subr.mxu0 0.0
    %255 = vmatpush1.xpose.msra.mxu0 %v212
    %256 = vmatprep.subr.mxu0 0.0
    %257 = vmatpush1.xpose.msra.mxu0 %v215
    %258 = vmatprep.subr.mxu0 0.0
    %259 = vmatpush1.xpose.msra.mxu0 %v218
    %260 = vmatprep.subr.mxu0 0.0
    %261 = vmatpush1.xpose.msra.mxu0 %v221
    %262 = vmatprep.subr.mxu0 0.0
    %263 = vmatpush1.xpose.msra.mxu0 %v224
    %264 = vmatprep.subr.mxu0 0.0
    %265 = vmatpush1.xpose.msra.mxu0 %v227
    %266 = vmatprep.subr.mxu0 0.0
    %267 = vmatpush1.xpose.msra.mxu0 %v230
    %268 = vmatprep.subr.mxu0 0.0
    %269 = vmatpush1.xpose.msra.mxu0 %v233
    %270 = vmatprep.subr.mxu0 0.0
    %271 = vmatpush1.xpose.msra.mxu0 %v236
    %272 = vmatprep.subr.mxu0 0.0
    %273 = vmatpush1.xpose.msra.mxu0 %v239
    %274 = vmatprep.subr.mxu0 0.0
    %275 = vmatpush1.xpose.msra.mxu0 %v242
    %276 = vmatprep.subr.mxu0 0.0
    %277 = vmatpush1.xpose.msra.mxu0 0.0
    %278 = vmatprep.subr.mxu0 0.0
    %279 = vmatpush1.xpose.msra.mxu0 0.0
    %280 = vmatprep.subr.mxu0 0.0
    %281 = vmatpush1.xpose.msra.mxu0 0.0
    %282 = vmatprep.subr.mxu0 0.0
    %283 = vmatpush1.xpose.msra.mxu0 0.0
    %284 = vmatprep.subr.mxu0 0.0
    %285 = vmatpush1.xpose.msra.mxu0 0.0
    %286 = vmatprep.subr.mxu0 0.0
    %287 = vmatpush1.xpose.msra.mxu0 0.0
    %288 = vmatprep.subr.mxu0 0.0
    %289 = vmatpush1.xpose.msra.mxu0 0.0
    %290 = vmatprep.subr.mxu0 0.0
    %291 = vmatpush1.xpose.msra.mxu0 0.0
    %292 = vmatprep.subr.mxu0 0.0
    %293 = vmatpush1.xpose.msra.mxu0 0.0
    %294 = vmatprep.subr.mxu0 0.0
    %295 = vmatpush1.xpose.msra.mxu0 0.0
    %296 = vmatprep.subr.mxu0 0.0
    %297 = vmatpush1.xpose.msra.mxu0 0.0
    %298 = vmatprep.subr.mxu0 0.0
    %299 = vmatpush1.xpose.msra.mxu0 0.0
    %300 = vmatprep.subr.mxu0 0.0
    %301 = vmatpush1.xpose.msra.mxu0 0.0
    %302 = vmatprep.subr.mxu0 0.0
    %303 = vmatpush1.xpose.msra.mxu0 0.0
    %304 = vmatprep.subr.mxu0 0.0
    %305 = vmatpush1.xpose.msra.mxu0 0.0
    %306 = vmatprep.subr.mxu0 0.0
    %307 = vmatpush1.xpose.msra.mxu0 0.0
    %308 = vmatprep.mubr.f32.mxu0 0.0
    %309 = vmatmul.mubr.f32.gmra.mrb[0].mxu0 %v194
    %v310 = vpop.f32.mrb[0].mxu0
    %v311 = vadd.f32 0.0, %v310
    %v312 = vpop.f32.mrb[0].mxu0
    %313 = vdwg.mxu0
    %v314 = vmul.f32 %v38, %v38
    %vm315 = vcmask 253952
    %v316 = vsel %vm315, %v314, 0.0
    %317 = vadd.xlane.f32.xlu0 %v316
    %v318 = vpop.xlane.xlu0 %317
    %v319 = vmax.f32 %v318, 1e-24
    %v320 = vrsqrt.pop %v319
    %v321 = vmax.f32 %v311, 1e-24
    %v322 = vrsqrt.pop %v321
    %v323 = vmul.f32 %v320, %v322
    %v324 = vmul.f32 %v174, %v323
    %v325 = vmax.f32 %v324, 0.0
    %v326 = vmin.f32 %v325, 1.0
    %327 = vst [vmem:[#allocation7] sm:$0x1] %v326
    // Predicated region
    $region18: #{_cosine_similarity_impl.1} parent=1 // pred_check
      _
    $region19: #{_cosine_similarity_impl.1} parent=1 // pred_check_branch
      %329 = sbr.rel (0) target = $region21
    $region20: #{_cosine_similarity_impl.1} parent=1 // pred_region
      %s331 = ssub.s32 16, 16
      %332 = vsyncadd [#allocation4], %s331
      %s334 = sshll.u32 [#allocation7], 4
      %s335 = int_to_ptr.vmem [resolvable:$true] %s334
      %337 = dma.vmem_to_hbm [thread:$0]  %s335, 16, %s2, [#allocation4]
    $region21: #{_cosine_similarity_impl.1} parent=1 // pred_fallthru
      _
    // Predicated region
    $region22: #{_cosine_similarity_impl.1} parent=1 // pred_check
      _
    $region23: #{_cosine_similarity_impl.1} parent=1 // pred_check_branch
      %339 = sbr.rel (0) target = $region25
    $region24: #{_cosine_similarity_impl.1} parent=1 // pred_region
      %340 = dma.done [#allocation4], 16
    $region25: #{_cosine_similarity_impl.1} parent=1 // pred_fallthru
      _
    %341 = vsyncpa [#allocation3], 1
    %342 = vsyncpa [#allocation6], 1
    %343 = vsyncpa [#allocation4], 1

</llo_original>
